<compile_context>
chip_gen: v5e
topology: v5e:2x2
jax: 0.10.0
libtpu: 0.0.40
codegen_flags: <defaults>
</compile_context>

<pallas_src>
import functools

import jax
import jax.numpy as jnp
from jax.experimental import pallas as pl
from jax.experimental.pallas import tpu as pltpu

BN_EPS = 1e-5
LANES = 128


# ----------------------------------------------------------------------------
# Fused kernel: pointwise conv + ReLU + global-avg-pool -> (Linear + folded BN)
# ----------------------------------------------------------------------------
def _fused_neck_kernel(inv_spatial, n_slices, slice_w,
                       x_ref, wconv_ref, bconv_ref, weff_ref, beff_ref,
                       o_ref, acc_ref):
    """One grid step = (batch b, spatial tile s).

    x_ref     : (1, C, ts) bf16   channels x flattened-spatial tile (NCHW-native)
    wconv_ref : (F, C)    bf16    1x1 conv weight (PyTorch layout, squeezed)
    bconv_ref : (F, 1)    f32     conv bias as a column (broadcasts over spatial)
    weff_ref  : (F, D)    f32     bottleneck weight with eval-BN scale folded in
    beff_ref  : (1, D)    f32     folded bias (conv-bias/mean/beta absorbed)
    o_ref     : (1, 1, D) f32     output row for batch b (lane-dense last dim)
    acc_ref   : (F, slice_w) f32  lane-dense pooled-sum accumulator (resident
                                  across the spatial grid axis)
    """
    s = pl.program_id(1)

    @pl.when(s == 0)
    def _init():
        acc_ref[...] = jnp.zeros_like(acc_ref)

    # pointwise 1x1 conv over this spatial tile: (F, C) @ (C, ts) on the MXU
    z = jnp.dot(wconv_ref[...], x_ref[0],
                preferred_element_type=jnp.float32)            # (F, ts) f32
    z = jnp.maximum(z + bconv_ref[...], 0.0)                   # bias + ReLU (VPU)

    # Lane-dense accumulation: VPU adds of 128-lane static slices; no per-step
    # XLU cross-lane reduce, no masked 1-lane stores.
    part = z[:, 0:slice_w]
    for i in range(1, n_slices):
        part = part + z[:, i * slice_w:(i + 1) * slice_w]
    acc_ref[...] += part

    @pl.when(s == pl.num_programs(1) - 1)
    def _finalize():
        # Single cross-lane reduce per output row, then global-average scale.
        feats = jnp.sum(acc_ref[...], axis=1, keepdims=True) * inv_spatial  # (F,1)
        # Bottleneck Linear (with eval-mode BN folded into w_eff / b_eff):
        # contract F of (F, 1) with F of (F, D) -> (1, D)
        y = jax.lax.dot_general(
            feats, weff_ref[...],
            dimension_numbers=(((0,), (0,)), ((), ())),
            preferred_element_type=jnp.float32)
        o_ref[0] = y + beff_ref[...]


# ----------------------------------------------------------------------------
# Wrapper
# ----------------------------------------------------------------------------
def _pick_spatial_tile(S, C, bytes_per_elem, x_budget_bytes=24 << 20):
    """Largest multiple-of-128 divisor of S whose *double-buffered* x block fits
    the budget (targets >= 512 lanes for real shapes).  If none fits, degrade to
    the smallest 128-multiple divisor (minimal footprint) instead of silently
    ignoring the budget; only if S has no 128-multiple divisor at all (tiny
    demo inputs) fall back to ts = S."""
    divisors = [t for t in range(LANES, S + 1, LANES) if S % t == 0]
    if not divisors:
        return S
    fitting = [t for t in divisors if 2 * C * t * bytes_per_elem <= x_budget_bytes]
    return max(fitting) if fitting else min(divisors)


def person_reid_neck_forward(x_nchw, params, spatial_tile=None):
    """PersonReidModelNeck.forward.  x_nchw: (B, C, H, W) float32 -> (B, D)."""
    B, C, H, W = x_nchw.shape
    S = H * W
    F = params["w_conv"].shape[0]
    D = params["w_bneck"].shape[1]

    # Fold eval-mode BatchNorm1d (and the bottleneck bias) into an effective
    # Linear:  y = feats @ (W * s) + ((b - mean) * s + beta),  s = gamma*rsqrt(var+eps)
    scale = params["bn_gamma"] * jax.lax.rsqrt(params["bn_var"] + BN_EPS)     # (1, D)
    w_eff = (params["w_bneck"] * scale).astype(jnp.float32)                   # (F, D)
    b_eff = ((params["b_bneck"] - params["bn_mean"]) * scale
             + params["bn_beta"]).astype(jnp.float32)                         # (1, D)

    # bf16 on the dominant HBM streams; NCHW -> (B, C, S) is a free reshape
    # (NO transpose: the kernel contracts over C directly).
    x_csp = x_nchw.reshape(B, C, S).astype(jnp.bfloat16)
    w_conv = params["w_conv"].astype(jnp.bfloat16)
    b_conv = params["b_conv"].astype(jnp.float32)

    ts = (spatial_tile if spatial_tile is not None
          else _pick_spatial_tile(S, C, x_csp.dtype.itemsize))
    assert S % ts == 0, "spatial tile must divide H*W"
    n_s = S // ts
    if ts % LANES == 0:
        n_slices, slice_w = ts // LANES, LANES
    else:          # tiny-S fallback only
        n_slices, slice_w = 1, ts

    kernel = functools.partial(_fused_neck_kernel, 1.0 / float(S),
                               n_slices, slice_w)
    const = lambda b, s: (0, 0)        # parameters: same (whole) block every step
    once = pl.Buffered(1)              # never-changing blocks -> single buffer

    grid_spec = pltpu.PrefetchScalarGridSpec(
        num_scalar_prefetch=0,
        grid=(B, n_s),
        in_specs=[
            pl.BlockSpec((1, C, ts), lambda b, s: (b, 0, s)),           # x (bf16)
            pl.BlockSpec((F, C), const, pipeline_mode=once),            # w_conv
            pl.BlockSpec((F, 1), const, pipeline_mode=once),            # b_conv
            pl.BlockSpec((F, D), const, pipeline_mode=once),            # w_eff
            pl.BlockSpec((1, D), const, pipeline_mode=once),            # b_eff
        ],
        out_specs=pl.BlockSpec((1, 1, D), lambda b, s: (b, 0, 0)),
        scratch_shapes=[pltpu.VMEM((F, slice_w), jnp.float32)],         # pooled sum
    )

    # VMEM budget from the actual buffer footprint (x double-buffered,
    # single-buffered params, double-buffered output, accumulator scratch).
    x_block_bytes = C * ts * x_csp.dtype.itemsize
    param_bytes = F * C * 2 + F * 4 + F * D * 4 + D * 4
    out_block_bytes = D * 4
    acc_bytes = F * slice_w * 4
    need = 2 * x_block_bytes + param_bytes + 2 * out_block_bytes + acc_bytes
    vmem_limit = int(min(max(2 * need, 32 << 20), 100 << 20))   # headroom; <v6e 128 MiB

    flops = 2 * B * S * C * F + 2 * B * F * D
    bytes_accessed = (B * C * S * 2 + F * C * 2          # bf16 streams
                      + F * 4 + F * D * 4 + D * 4 + B * D * 4)

    out = pl.pallas_call(
        kernel,
        out_shape=jax.ShapeDtypeStruct((B, 1, D), jnp.float32),
        grid_spec=grid_spec,
        compiler_params=pltpu.CompilerParams(
            dimension_semantics=("parallel", "arbitrary"),
            vmem_limit_bytes=vmem_limit,
        ),
        cost_estimate=pl.CostEstimate(
            flops=flops, transcendentals=0, bytes_accessed=bytes_accessed),
    )(x_csp, w_conv, b_conv, w_eff, b_eff)

    return out.reshape(B, D)


# ----------------------------------------------------------------------------
# Deterministic synthetic parameters + pure-JAX reference
# ----------------------------------------------------------------------------
def _make_params(key, C, F, D):
    ks = jax.random.split(key, 6)
    return dict(
        # 1x1 conv: PyTorch weight (F, C, 1, 1) squeezed -> (F, C); bias column
        w_conv=0.1 * jax.random.normal(ks[0], (F, C), jnp.float32),
        b_conv=0.1 * jax.random.normal(ks[1], (F, 1), jnp.float32),
        # bottleneck Linear weight stored pre-transposed as (F, D)
        w_bneck=0.1 * jax.random.normal(ks[2], (F, D), jnp.float32),
        b_bneck=0.1 * jax.random.normal(ks[3], (1, D), jnp.float32),
        bn_gamma=1.0 + 0.1 * jax.random.normal(ks[4], (1, D), jnp.float32),
        bn_beta=0.1 * jax.random.normal(ks[5], (1, D), jnp.float32),
        # eval-mode BatchNorm1d running statistics (deterministic, synthetic)
        # TODO(synk): training-mode BN (batch statistics + momentum update) not modeled.
        bn_mean=jnp.zeros((1, D), jnp.float32),
        bn_var=jnp.ones((1, D), jnp.float32),
    )


def _reference(x_nchw, p):
    """Pure-JAX reference with the same bf16 input precision as the kernel."""
    B, C, H, W = x_nchw.shape
    xb = x_nchw.reshape(B, C, H * W).astype(jnp.bfloat16)
    wb = p["w_conv"].astype(jnp.bfloat16)
    y = jnp.einsum("fc,bcs->bfs", wb, xb, preferred_element_type=jnp.float32)
    y = jnp.maximum(y + p["b_conv"][None, :, :], 0.0)
    feats = jnp.mean(y, axis=2)                                   # (B, F)
    z = jnp.dot(feats, p["w_bneck"]) + p["b_bneck"]
    return ((z - p["bn_mean"]) / jnp.sqrt(p["bn_var"] + BN_EPS)
            * p["bn_gamma"] + p["bn_beta"])


if __name__ == "__main__":
    B, C, H, W = 2, 4, 16, 16     # NCHW input, like PyTorch
    F, D = 128, 128               # lane-dense backbone / bottleneck dims

    key = jax.random.PRNGKey(0)
    k_x, k_p = jax.random.split(key)
    x = jax.random.normal(k_x, (B, C, H, W), jnp.float32)
    params = _make_params(k_p, C, F, D)

    ref = _reference(x, params)

    # Default tile picking (ts = 256 here): exercises the lane-slice VPU
    # accumulation path (two 128-lane slices per step).
    out = jax.block_until_ready(person_reid_neck_forward(x, params))
    assert out.shape == (B, D)
    err = jnp.max(jnp.abs(out - ref))
    assert jnp.allclose(out, ref, atol=1e-2, rtol=1e-2), f"max abs err {err}"

    # Forced ts = 128: exercises the cross-grid-step resident accumulator path.
    out2 = jax.block_until_ready(
        person_reid_neck_forward(x, params, spatial_tile=128))
    err2 = jnp.max(jnp.abs(out2 - ref))
    assert jnp.allclose(out2, ref, atol=1e-2, rtol=1e-2), f"max abs err {err2}"

    print("KERNEL_OK")
</pallas_src>

<mosaic_0001>
module attributes {stable_mosaic.version = 11 : i64} {
  func.func @_fused_neck_kernel(%arg0: i32, %arg1: i32, %arg2: memref<1x4x256xbf16, #tpu.memory_space<vmem>>, %arg3: memref<128x4xbf16, #tpu.memory_space<vmem>>, %arg4: memref<128x1xf32, #tpu.memory_space<vmem>>, %arg5: memref<128x128xf32, #tpu.memory_space<vmem>>, %arg6: memref<1x128xf32, #tpu.memory_space<vmem>>, %arg7: memref<1x1x128xf32, #tpu.memory_space<vmem>>, %arg8: memref<128x128xf32, #tpu.memory_space<vmem>>) attributes {dimension_semantics = [#tpu.dimension_semantics<parallel>, #tpu.dimension_semantics<arbitrary>], iteration_bounds = array<i64: 2, 1>, scalar_prefetch = 0 : i64, scratch_operands = 1 : i64, tpu.core_type = #tpu.core_type<tc>, window_params = [{transform_indices = @transform_0, window_bounds = array<i64: 1, 4, 256>}, {pipeline_mode = #tpu.pipeline_mode<synchronous>, transform_indices = @transform_1, window_bounds = array<i64: 128, 4>}, {pipeline_mode = #tpu.pipeline_mode<synchronous>, transform_indices = @transform_2, window_bounds = array<i64: 128, 1>}, {pipeline_mode = #tpu.pipeline_mode<synchronous>, transform_indices = @transform_3, window_bounds = array<i64: 128, 128>}, {pipeline_mode = #tpu.pipeline_mode<synchronous>, transform_indices = @transform_4, window_bounds = array<i64: 1, 128>}, {transform_indices = @transform_5, window_bounds = array<i64: 1, 1, 128>}]} {
    %c0_i32 = arith.constant 0 : i32
    %0 = arith.cmpi eq, %arg1, %c0_i32 : i32
    %1 = arith.extui %0 : i1 to i32
    %c0_i32_0 = arith.constant 0 : i32
    %2 = arith.cmpi ne, %1, %c0_i32_0 : i32
    scf.if %2 {
      %cst_14 = arith.constant 0.000000e+00 : f32
      %21 = vector.broadcast %cst_14 : f32 to vector<128x128xf32>
      %c0_15 = arith.constant 0 : index
      %c0_16 = arith.constant 0 : index
      %22 = vector.load %arg8[%c0_15, %c0_16] : memref<128x128xf32, #tpu.memory_space<vmem>>, vector<128x128xf32>
      tpu.vector_store %arg8[%c0_15, %c0_16], %21 {strides = array<i32>} : memref<128x128xf32, #tpu.memory_space<vmem>>, vector<128x128xf32>,
    } else {
    }
    %c0 = arith.constant 0 : index
    %c0_1 = arith.constant 0 : index
    %3 = vector.load %arg3[%c0, %c0_1] : memref<128x4xbf16, #tpu.memory_space<vmem>>, vector<128x4xbf16>
    %c0_2 = arith.constant 0 : index
    %c0_3 = arith.constant 0 : index
    %c0_4 = arith.constant 0 : index
    %4 = vector.load %arg2[%c0_2, %c0_3, %c0_4] : memref<1x4x256xbf16, #tpu.memory_space<vmem>>, vector<1x4x256xbf16>
    %5 = vector.shape_cast %4 : vector<1x4x256xbf16> to vector<4x256xbf16>
    %cst = arith.constant dense<0.000000e+00> : vector<128x256xf32>
    %6 = tpu.matmul %3, %5, %cst {dimension_numbers = #tpu.dot_dimension_numbers<[1], [0], [0], [1], [0, 0, 1, 1], [], []>} : vector<128x4xbf16>, vector<4x256xbf16>, vector<128x256xf32> -> vector<128x256xf32>
    %c0_5 = arith.constant 0 : index
    %c0_6 = arith.constant 0 : index
    %7 = vector.load %arg4[%c0_5, %c0_6] : memref<128x1xf32, #tpu.memory_space<vmem>>, vector<128x1xf32>
    %8 = vector.broadcast %7 : vector<128x1xf32> to vector<128x256xf32>
    %9 = arith.addf %6, %8 : vector<128x256xf32>
    %cst_7 = arith.constant 0.000000e+00 : f32
    %10 = vector.broadcast %cst_7 : f32 to vector<128x256xf32>
    %11 = arith.maximumf %9, %10 : vector<128x256xf32>
    %12 = vector.extract_strided_slice %11 {offsets = [0, 0], sizes = [128, 128], strides = [1, 1]} : vector<128x256xf32> to vector<128x128xf32>
    %13 = vector.extract_strided_slice %11 {offsets = [0, 128], sizes = [128, 128], strides = [1, 1]} : vector<128x256xf32> to vector<128x128xf32>
    %14 = arith.addf %12, %13 : vector<128x128xf32>
    %c0_8 = arith.constant 0 : index
    %c0_9 = arith.constant 0 : index
    %15 = vector.load %arg8[%c0_8, %c0_9] : memref<128x128xf32, #tpu.memory_space<vmem>>, vector<128x128xf32>
    %16 = arith.addf %15, %14 : vector<128x128xf32>
    %c0_10 = arith.constant 0 : index
    %c0_11 = arith.constant 0 : index
    %17 = vector.load %arg8[%c0_10, %c0_11] : memref<128x128xf32, #tpu.memory_space<vmem>>, vector<128x128xf32>
    tpu.vector_store %arg8[%c0_10, %c0_11], %16 {strides = array<i32>} : memref<128x128xf32, #tpu.memory_space<vmem>>, vector<128x128xf32>,
    %c0_i32_12 = arith.constant 0 : i32
    %18 = arith.cmpi eq, %arg1, %c0_i32_12 : i32
    %19 = arith.extui %18 : i1 to i32
    %c0_i32_13 = arith.constant 0 : i32
    %20 = arith.cmpi ne, %19, %c0_i32_13 : i32
    scf.if %20 {
      %c0_14 = arith.constant 0 : index
      %c0_15 = arith.constant 0 : index
      %21 = vector.load %arg8[%c0_14, %c0_15] : memref<128x128xf32, #tpu.memory_space<vmem>>, vector<128x128xf32>
      %cst_16 = arith.constant dense<0.000000e+00> : vector<128xf32>
      %22 = vector.multi_reduction <add>, %21, %cst_16 [1] : vector<128x128xf32> to vector<128xf32>
      %23 = vector.shape_cast %22 : vector<128xf32> to vector<128x1xf32>
      %cst_17 = arith.constant 3.906250e-03 : f32
      %24 = vector.broadcast %cst_17 : f32 to vector<128x1xf32>
      %25 = arith.mulf %23, %24 : vector<128x1xf32>
      %c0_18 = arith.constant 0 : index
      %c0_19 = arith.constant 0 : index
      %26 = vector.load %arg5[%c0_18, %c0_19] : memref<128x128xf32, #tpu.memory_space<vmem>>, vector<128x128xf32>
      %cst_20 = arith.constant dense<0.000000e+00> : vector<1x128xf32>
      %27 = tpu.matmul %25, %26, %cst_20 {dimension_numbers = #tpu.dot_dimension_numbers<[0], [0], [1], [1], [0, 1, 1, 1], [], []>} : vector<128x1xf32>, vector<128x128xf32>, vector<1x128xf32> -> vector<1x128xf32>
      %c0_21 = arith.constant 0 : index
      %c0_22 = arith.constant 0 : index
      %28 = vector.load %arg6[%c0_21, %c0_22] : memref<1x128xf32, #tpu.memory_space<vmem>>, vector<1x128xf32>
      %29 = arith.addf %27, %28 : vector<1x128xf32>
      %c0_23 = arith.constant 0 : index
      %c0_24 = arith.constant 0 : index
      %c0_25 = arith.constant 0 : index
      %30 = vector.load %arg7[%c0_23, %c0_24, %c0_25] : memref<1x1x128xf32, #tpu.memory_space<vmem>>, vector<1x1x128xf32>
      %31 = vector.shape_cast %30 : vector<1x1x128xf32> to vector<1x128xf32>
      %32 = vector.shape_cast %29 : vector<1x128xf32> to vector<1x1x128xf32>
      tpu.vector_store %arg7[%c0_23, %c0_24, %c0_25], %32 {strides = array<i32>} : memref<1x1x128xf32, #tpu.memory_space<vmem>>, vector<1x1x128xf32>,
    } else {
    }
    return
  }
  func.func @transform_0(%arg0: i32, %arg1: i32) -> (i32, i32, i32) {
    %c0_i32 = arith.constant 0 : i32
    %c0_i32_0 = arith.constant 0 : i32
    return %arg0, %c0_i32, %arg1 : i32, i32, i32
  }
  func.func @transform_1(%arg0: i32, %arg1: i32) -> (i32, i32) {
    %c0_i32 = arith.constant 0 : i32
    %c0_i32_0 = arith.constant 0 : i32
    %c0_i32_1 = arith.constant 0 : i32
    return %c0_i32, %c0_i32_0 : i32, i32
  }
  func.func @transform_2(%arg0: i32, %arg1: i32) -> (i32, i32) {
    %c0_i32 = arith.constant 0 : i32
    %c0_i32_0 = arith.constant 0 : i32
    %c0_i32_1 = arith.constant 0 : i32
    return %c0_i32, %c0_i32_0 : i32, i32
  }
  func.func @transform_3(%arg0: i32, %arg1: i32) -> (i32, i32) {
    %c0_i32 = arith.constant 0 : i32
    %c0_i32_0 = arith.constant 0 : i32
    %c0_i32_1 = arith.constant 0 : i32
    return %c0_i32, %c0_i32_0 : i32, i32
  }
  func.func @transform_4(%arg0: i32, %arg1: i32) -> (i32, i32) {
    %c0_i32 = arith.constant 0 : i32
    %c0_i32_0 = arith.constant 0 : i32
    %c0_i32_1 = arith.constant 0 : i32
    return %c0_i32, %c0_i32_0 : i32, i32
  }
  func.func @transform_5(%arg0: i32, %arg1: i32) -> (i32, i32, i32) {
    %c0_i32 = arith.constant 0 : i32
    %c0_i32_0 = arith.constant 0 : i32
    %c0_i32_1 = arith.constant 0 : i32
    return %arg0, %c0_i32, %c0_i32_0 : i32, i32, i32
  }
}

</mosaic_0001>

<llo_original>
// kernel: tpu_custom_call.1
$region0: #{tpu_custom_call.1}
  #allocation0 [shape = 'u32[]', space=smem, size = 0x4, offset = 0x4, fixed_abs, tag = 'smem constant byte address 0x4 - core index']
  #allocation1 [shape = 'u32[72,128]{1,0:T(1,128)}', space=vmem, size = 0x9000, scoped, tag = 'internal scratch']
  #allocation2 [shape = 'f32[128,128]{1,0:T(8,128)}', space=vmem, size = 0x10000, scoped, tag = 'scratch operand']
  %s0 = inlined_call_operand.vmem [shape: bf16[2,4,256], index: 0, kind: input, shape index: {}]
  %s1 = inlined_call_operand.vmem [shape: bf16[128,4], index: 1, kind: input, shape index: {}]
  %s2 = inlined_call_operand.vmem [shape: f32[128,1], index: 2, kind: input, shape index: {}]
  %s3 = inlined_call_operand.vmem [shape: f32[128,128], index: 3, kind: input, shape index: {}]
  %s4 = inlined_call_operand.vmem [shape: f32[1,128], index: 4, kind: input, shape index: {}]
  %s5 = inlined_call_operand.hbm [shape: f32[2,1,128], index: 5, kind: output, shape index: {}]
  %s6 = sld [smem:[#allocation0]]
  $region61: #{tpu_custom_call.1} parent=0
    _
  %s8 = ssub.s32 1, %s6
  %s9 = scalar_select 0, %s8, %s6
  $region1: #{tpu_custom_call.1} parent=0
    #allocation3 [shape = 'u8[1024]{0}', space=vmem, size = 0x400, scoped, tag = 'output window, operand 0']
    #allocation4 [shape = 's32[2]{0}', space=sflag, size = 0x8, scoped, tag = 'scoped memory for tpu_custom_call.1']
    %10 = vsyncpa [#allocation4], 0
    %s11 = scalar_lea.sflag [#allocation4], 1
    %12 = vsyncpa %s11, 0
    loop: start=0, step=1, limit=4
    $region2: #{tpu_custom_call.1} parent=1 // loop_pre_header
      _
    $region3: #{tpu_custom_call.1} parent=1 // loop_header
      %s14 = sphi 0, %s18
      %p15 = scmp.ge.s32.totalorder %s14, 4
      %s21 = sphi 0, %s33
      %s22 = sphi 0, %s29
      %s23 = sphi 0, %s21
      %s24 = sphi 0, %s22
      %s25 = sphi 0, %s23
      %s26 = sphi 0, %s24
      %s38 = sphi 0, %s40
      %s41 = sphi 0, %s38
      %s42 = sphi 0, %s41
      %s58 = sphi 0, %s42
      %s62 = sphi 0, %s62
      %s64 = sphi 0, %s62
      %s65 = sphi 0, %s64
      %s79 = sphi 0, %s65
      %s83 = sphi 0, %s83
      %s85 = sphi 0, %s83
      %s86 = sphi 0, %s85
      %s100 = sphi 0, %s86
      %s104 = sphi 0, %s104
      %s106 = sphi 0, %s104
      %s107 = sphi 0, %s106
      %s121 = sphi 0, %s107
      %s125 = sphi 0, %s125
      %s127 = sphi 0, %s125
      %s128 = sphi 0, %s127
      %s142 = sphi 0, %s128
      %s148 = sphi 0, %s150
      %s151 = sphi 0, %s148
      %s152 = sphi 0, %s151
      %s168 = sphi 0, %s152
    $region4: #{tpu_custom_call.1} parent=1 // loop_header_branch
      %17 = sbr.rel (%p15) target = $region8
    $region5: #{tpu_custom_call.1} parent=1 // loop_body
      %s19 = ssub.s32 %s14, 1
      %s20 = ssub.s32 %s14, 2
      %s27 = sadd.s32 1, %s22
      %p28 = scmp.ge.s32.totalorder %s27, 1
      %s29 = scalar_select %p28, 0, %s27
      %s30 = sadd.s32 1, %s21
      %s31 = scalar_select %p28, %s30, %s21
      %p32 = scmp.ge.s32.totalorder %s31, 2
      %s33 = scalar_select %p32, 0, %s31
      %s34 = ssub.s32 %s21, %s33
      %s35 = ssub.s32 %s22, %s29
      %s36 = sor.u32 %s34, %s35
      %p37 = scmp.eq.s32.totalorder %s36, 0
      %s39 = sadd.s32 %s38, 1
      %s40 = scalar_select %p37, %s38, %s39
      %p43 = pneg %p37
      %p44 = scmp.eq.s32.totalorder %s14, 1
      %p45 = por %p43, %p44
      %p46 = scmp.ne.s32.totalorder %s38, %s41
      %p47 = scmp.eq.s32.totalorder %s14, 0
      %p48 = por %p46, %p47
      %p49 = scmp.ne.s32.totalorder %s38, %s41
      %p50 = scmp.eq.s32.totalorder %s19, 1
      %p51 = por %p49, %p50
      %p52 = scmp.ne.s32.totalorder %s41, %s42
      %p53 = scmp.eq.s32.totalorder %s19, 0
      %p54 = por %p52, %p53
      %p55 = scmp.ne.s32.totalorder %s41, %s42
      %p56 = scmp.eq.s32.totalorder %s20, 1
      %p57 = por %p55, %p56
      %p59 = scmp.ne.s32.totalorder %s42, %s58
      %p60 = scmp.eq.s32.totalorder %s20, 0
      %p61 = por %p59, %p60
      %s63 = sadd.s32 %s62, 1
      %p66 = scmp.eq.s32.totalorder %s14, 1
      %p67 = scmp.ne.s32.totalorder %s62, %s64
      %p68 = scmp.eq.s32.totalorder %s14, 0
      %p69 = por %p67, %p68
      %p70 = scmp.ne.s32.totalorder %s62, %s64
      %p71 = scmp.eq.s32.totalorder %s19, 1
      %p72 = por %p70, %p71
      %p73 = scmp.ne.s32.totalorder %s64, %s65
      %p74 = scmp.eq.s32.totalorder %s19, 0
      %p75 = por %p73, %p74
      %p76 = scmp.ne.s32.totalorder %s64, %s65
      %p77 = scmp.eq.s32.totalorder %s20, 1
      %p78 = por %p76, %p77
      %p80 = scmp.ne.s32.totalorder %s65, %s79
      %p81 = scmp.eq.s32.totalorder %s20, 0
      %p82 = por %p80, %p81
      %s84 = sadd.s32 %s83, 1
      %p87 = scmp.eq.s32.totalorder %s14, 1
      %p88 = scmp.ne.s32.totalorder %s83, %s85
      %p89 = scmp.eq.s32.totalorder %s14, 0
      %p90 = por %p88, %p89
      %p91 = scmp.ne.s32.totalorder %s83, %s85
      %p92 = scmp.eq.s32.totalorder %s19, 1
      %p93 = por %p91, %p92
      %p94 = scmp.ne.s32.totalorder %s85, %s86
      %p95 = scmp.eq.s32.totalorder %s19, 0
      %p96 = por %p94, %p95
      %p97 = scmp.ne.s32.totalorder %s85, %s86
      %p98 = scmp.eq.s32.totalorder %s20, 1
      %p99 = por %p97, %p98
      %p101 = scmp.ne.s32.totalorder %s86, %s100
      %p102 = scmp.eq.s32.totalorder %s20, 0
      %p103 = por %p101, %p102
      %s105 = sadd.s32 %s104, 1
      %p108 = scmp.eq.s32.totalorder %s14, 1
      %p109 = scmp.ne.s32.totalorder %s104, %s106
      %p110 = scmp.eq.s32.totalorder %s14, 0
      %p111 = por %p109, %p110
      %p112 = scmp.ne.s32.totalorder %s104, %s106
      %p113 = scmp.eq.s32.totalorder %s19, 1
      %p114 = por %p112, %p113
      %p115 = scmp.ne.s32.totalorder %s106, %s107
      %p116 = scmp.eq.s32.totalorder %s19, 0
      %p117 = por %p115, %p116
      %p118 = scmp.ne.s32.totalorder %s106, %s107
      %p119 = scmp.eq.s32.totalorder %s20, 1
      %p120 = por %p118, %p119
      %p122 = scmp.ne.s32.totalorder %s107, %s121
      %p123 = scmp.eq.s32.totalorder %s20, 0
      %p124 = por %p122, %p123
      %s126 = sadd.s32 %s125, 1
      %p129 = scmp.eq.s32.totalorder %s14, 1
      %p130 = scmp.ne.s32.totalorder %s125, %s127
      %p131 = scmp.eq.s32.totalorder %s14, 0
      %p132 = por %p130, %p131
      %p133 = scmp.ne.s32.totalorder %s125, %s127
      %p134 = scmp.eq.s32.totalorder %s19, 1
      %p135 = por %p133, %p134
      %p136 = scmp.ne.s32.totalorder %s127, %s128
      %p137 = scmp.eq.s32.totalorder %s19, 0
      %p138 = por %p136, %p137
      %p139 = scmp.ne.s32.totalorder %s127, %s128
      %p140 = scmp.eq.s32.totalorder %s20, 1
      %p141 = por %p139, %p140
      %p143 = scmp.ne.s32.totalorder %s128, %s142
      %p144 = scmp.eq.s32.totalorder %s20, 0
      %p145 = por %p143, %p144
      %s146 = ssub.s32 %s21, %s33
      %p147 = scmp.eq.s32.totalorder %s146, 0
      %s149 = sadd.s32 %s148, 1
      %s150 = scalar_select %p147, %s148, %s149
      %p153 = pneg %p147
      %p154 = scmp.eq.s32.totalorder %s14, 1
      %p155 = por %p153, %p154
      %p156 = scmp.ne.s32.totalorder %s148, %s151
      %p157 = scmp.eq.s32.totalorder %s14, 0
      %p158 = por %p156, %p157
      %p159 = scmp.ne.s32.totalorder %s148, %s151
      %p160 = scmp.eq.s32.totalorder %s19, 1
      %p161 = por %p159, %p160
      %p162 = scmp.ne.s32.totalorder %s151, %s152
      %p163 = scmp.eq.s32.totalorder %s19, 0
      %p164 = por %p162, %p163
      %p165 = scmp.ne.s32.totalorder %s151, %s152
      %p166 = scmp.eq.s32.totalorder %s20, 1
      %p167 = por %p165, %p166
      %p169 = scmp.ne.s32.totalorder %s152, %s168
      %p170 = scmp.eq.s32.totalorder %s20, 0
      %p171 = por %p169, %p170
      %p172 = scmp.le.s32.totalorder 1, %s14
      %p173 = scmp.lt.s32.totalorder %s14, 3
      %p174 = pnand %p172, %p173
      %p175 = pneg %p174
      // Predicated region
      $region9: #{tpu_custom_call.1} parent=5 // pred_check
        _
      $region10: #{tpu_custom_call.1} parent=5 // pred_check_branch
        %177 = sbr.rel (%p174) target = $region12
      $region11: #{tpu_custom_call.1} parent=5 // pred_region
        %s178 = ssub.s32 %s14, 1
        // Predicated region
        $region13: #{tpu_custom_call.1} parent=11 // pred_check
          %p179 = pneg %p75
        $region14: #{tpu_custom_call.1} parent=11 // pred_check_branch
          %181 = sbr.rel (%p179) target = $region16
        $region15: #{tpu_custom_call.1} parent=11 // pred_region
          _
        $region16: #{tpu_custom_call.1} parent=11 // pred_fallthru
          _
        // Predicated region
        $region17: #{tpu_custom_call.1} parent=11 // pred_check
          %p182 = pneg %p96
        $region18: #{tpu_custom_call.1} parent=11 // pred_check_branch
          %184 = sbr.rel (%p182) target = $region20
        $region19: #{tpu_custom_call.1} parent=11 // pred_region
          _
        $region20: #{tpu_custom_call.1} parent=11 // pred_fallthru
          _
        // Predicated region
        $region21: #{tpu_custom_call.1} parent=11 // pred_check
          %p185 = pneg %p117
        $region22: #{tpu_custom_call.1} parent=11 // pred_check_branch
          %187 = sbr.rel (%p185) target = $region24
        $region23: #{tpu_custom_call.1} parent=11 // pred_region
          _
        $region24: #{tpu_custom_call.1} parent=11 // pred_fallthru
          _
        // Predicated region
        $region25: #{tpu_custom_call.1} parent=11 // pred_check
          %p188 = pneg %p138
        $region26: #{tpu_custom_call.1} parent=11 // pred_check_branch
          %190 = sbr.rel (%p188) target = $region28
        $region27: #{tpu_custom_call.1} parent=11 // pred_region
          _
        $region28: #{tpu_custom_call.1} parent=11 // pred_fallthru
          _
      $region12: #{tpu_custom_call.1} parent=5 // pred_fallthru
        _
      %p191 = scmp.lt.s32.totalorder %s14, 2
      // Predicated region
      $region29: #{tpu_custom_call.1} parent=5 // pred_check
        %p192 = pneg %p191
      $region30: #{tpu_custom_call.1} parent=5 // pred_check_branch
        %194 = sbr.rel (%p192) target = $region32
      $region31: #{tpu_custom_call.1} parent=5 // pred_region
        // Predicated region
        $region33: #{tpu_custom_call.1} parent=31 // pred_check
          %p195 = pneg %p48
        $region34: #{tpu_custom_call.1} parent=31 // pred_check_branch
          %197 = sbr.rel (%p195) target = $region36
        $region35: #{tpu_custom_call.1} parent=31 // pred_region
          %s198 = smul.u32 2, %s22
          %p199 = scmp.lt.s32.totalorder %s21, 1
          %s200 = scalar_select %p199, %s21, 1
          %p201 = scmp.lt.s32.totalorder %s198, 1
          %s202 = scalar_select %p201, %s198, 1
          %s203 = smul.addr %s200, 2
          %s204 = sadd.s32 %s202, %s203
          %s205 = smul.addr %s204, 2
          %s206 = scalar_lea.vmem %s0, %s205
          %s207 = smul.u32 2, %s22
        $region36: #{tpu_custom_call.1} parent=31 // pred_fallthru
          _
      $region32: #{tpu_custom_call.1} parent=5 // pred_fallthru
        _
      %p208 = scmp.le.s32.totalorder 1, %s14
      %p209 = scmp.lt.s32.totalorder %s14, 3
      %p210 = pnand %p208, %p209
      %p211 = pneg %p210
      // Predicated region
      $region37: #{tpu_custom_call.1} parent=5 // pred_check
        _
      $region38: #{tpu_custom_call.1} parent=5 // pred_check_branch
        %213 = sbr.rel (%p210) target = $region40
      $region39: #{tpu_custom_call.1} parent=5 // pred_region
        %s214 = ssub.s32 %s14, 1
        %s215 = smul.u32 2, %s24
        %p216 = scmp.lt.s32.totalorder %s23, 1
        %s217 = scalar_select %p216, %s23, 1
        %p218 = scmp.lt.s32.totalorder %s215, 1
        %s219 = scalar_select %p218, %s215, 1
        %s220 = smul.addr %s217, 2
        %s221 = sadd.s32 %s219, %s220
        %s222 = smul.addr %s221, 2
        %s223 = scalar_lea.vmem %s0, %s222
        %p224 = pneg %p54
        %p225 = pneg %p51
        %p226 = pneg %p75
        %p227 = pneg %p72
        %p228 = pneg %p96
        %p229 = pneg %p93
        %p230 = pneg %p117
        %p231 = pneg %p114
        %p232 = pneg %p138
        %p233 = pneg %p135
        %p234 = pneg %p164
        %p235 = pneg %p161
        %s236 = sand.u32 %s151, 1
        %s237 = scalar_lea.sflag [#allocation4], %s236
        %s238 = sand.u32 %s151, 1
        %s239 = scalar_lea.vmem [#allocation3], %s238
        %s240 = smul.u32 2, %s24
        %p241 = scmp.lt.s32.totalorder %s23, 1
        %s242 = scalar_select %p241, %s23, 1
        %p243 = scmp.lt.s32.totalorder %s240, 1
        %s244 = scalar_select %p243, %s240, 1
        %s245 = smul.addr %s242, 2
        %s246 = sadd.s32 %s244, %s245
        %s247 = smul.addr %s246, 2
        %s248 = scalar_lea.vmem %s0, %s247
        %s249 = smul.u32 2, %s24
        %p251 = scmp.eq.s32.totalorder %s24, 0
        // Predicated region
        $region41: #{tpu_custom_call.1} parent=39 // pred_check
          %p252 = pneg %p251
        $region42: #{tpu_custom_call.1} parent=39 // pred_check_branch
          %254 = sbr.rel (%p252) target = $region44
        $region43: #{tpu_custom_call.1} parent=39 // pred_region
          %255 = vst [vmem:[#allocation2] sm:$0xff] 0.0
          %256 = vst [vmem:[#allocation2 + $0x8] sm:$0xff] 0.0
          %257 = vst [vmem:[#allocation2 + $0x10] sm:$0xff] 0.0
          %258 = vst [vmem:[#allocation2 + $0x18] sm:$0xff] 0.0
          %259 = vst [vmem:[#allocation2 + $0x20] sm:$0xff] 0.0
          %260 = vst [vmem:[#allocation2 + $0x28] sm:$0xff] 0.0
          %261 = vst [vmem:[#allocation2 + $0x30] sm:$0xff] 0.0
          %262 = vst [vmem:[#allocation2 + $0x38] sm:$0xff] 0.0
          %263 = vst [vmem:[#allocation2 + $0x40] sm:$0xff] 0.0
          %264 = vst [vmem:[#allocation2 + $0x48] sm:$0xff] 0.0
          %265 = vst [vmem:[#allocation2 + $0x50] sm:$0xff] 0.0
          %266 = vst [vmem:[#allocation2 + $0x58] sm:$0xff] 0.0
          %267 = vst [vmem:[#allocation2 + $0x60] sm:$0xff] 0.0
          %268 = vst [vmem:[#allocation2 + $0x68] sm:$0xff] 0.0
          %269 = vst [vmem:[#allocation2 + $0x70] sm:$0xff] 0.0
          %270 = vst [vmem:[#allocation2 + $0x78] sm:$0xff] 0.0
        $region44: #{tpu_custom_call.1} parent=39 // pred_fallthru
          _
        %v271 = vld [vmem:[%s1] sm:$0xf]
        %v272 = vld [vmem:[%s1 + $0x4] sm:$0xf]
        %v273 = vld [vmem:[%s1 + $0x8] sm:$0xf]
        %v274 = vld [vmem:[%s1 + $0xc] sm:$0xf]
        %v275 = vld [vmem:[%s1 + $0x10] sm:$0xf]
        %v276 = vld [vmem:[%s1 + $0x14] sm:$0xf]
        %v277 = vld [vmem:[%s1 + $0x18] sm:$0xf]
        %v278 = vld [vmem:[%s1 + $0x1c] sm:$0xf]
        %v279 = vld [vmem:[%s1 + $0x20] sm:$0xf]
        %v280 = vld [vmem:[%s1 + $0x24] sm:$0xf]
        %v281 = vld [vmem:[%s1 + $0x28] sm:$0xf]
        %v282 = vld [vmem:[%s1 + $0x2c] sm:$0xf]
        %v283 = vld [vmem:[%s1 + $0x30] sm:$0xf]
        %v284 = vld [vmem:[%s1 + $0x34] sm:$0xf]
        %v285 = vld [vmem:[%s1 + $0x38] sm:$0xf]
        %v286 = vld [vmem:[%s1 + $0x3c] sm:$0xf]
        %v287 = vld [vmem:[%s248] sm:$0xf]
        %v288 = vld [vmem:[%s2] sm:$0xff]
        %v289 = vld [vmem:[%s2 + $0x8] sm:$0xff]
        %v290 = vld [vmem:[%s2 + $0x10] sm:$0xff]
        %v291 = vld [vmem:[%s2 + $0x18] sm:$0xff]
        %v292 = vld [vmem:[%s2 + $0x20] sm:$0xff]
        %v293 = vld [vmem:[%s2 + $0x28] sm:$0xff]
        %v294 = vld [vmem:[%s2 + $0x30] sm:$0xff]
        %v295 = vld [vmem:[%s2 + $0x38] sm:$0xff]
        %v296 = vld [vmem:[%s2 + $0x40] sm:$0xff]
        %v297 = vld [vmem:[%s2 + $0x48] sm:$0xff]
        %v298 = vld [vmem:[%s2 + $0x50] sm:$0xff]
        %v299 = vld [vmem:[%s2 + $0x58] sm:$0xff]
        %v300 = vld [vmem:[%s2 + $0x60] sm:$0xff]
        %v301 = vld [vmem:[%s2 + $0x68] sm:$0xff]
        %v302 = vld [vmem:[%s2 + $0x70] sm:$0xff]
        %v303 = vld [vmem:[%s2 + $0x78] sm:$0xff]
        %305 = vset.pattern.permute.xlu0 0
        %306 = vperm.xlu0 %305, %v288
        %v307 = vpop.permute.xlu0 %306
        %310 = vset.pattern.permute.xlu0 0
        %311 = vperm.xlu0 %310, %v289
        %v312 = vpop.permute.xlu0 %311
        %315 = vset.pattern.permute.xlu0 0
        %316 = vperm.xlu0 %315, %v290
        %v317 = vpop.permute.xlu0 %316
        %320 = vset.pattern.permute.xlu0 0
        %321 = vperm.xlu0 %320, %v291
        %v322 = vpop.permute.xlu0 %321
        %325 = vset.pattern.permute.xlu0 0
        %326 = vperm.xlu0 %325, %v292
        %v327 = vpop.permute.xlu0 %326
        %330 = vset.pattern.permute.xlu0 0
        %331 = vperm.xlu0 %330, %v293
        %v332 = vpop.permute.xlu0 %331
        %335 = vset.pattern.permute.xlu0 0
        %336 = vperm.xlu0 %335, %v294
        %v337 = vpop.permute.xlu0 %336
        %340 = vset.pattern.permute.xlu0 0
        %341 = vperm.xlu0 %340, %v295
        %v342 = vpop.permute.xlu0 %341
        %345 = vset.pattern.permute.xlu0 0
        %346 = vperm.xlu0 %345, %v296
        %v347 = vpop.permute.xlu0 %346
        %350 = vset.pattern.permute.xlu0 0
        %351 = vperm.xlu0 %350, %v297
        %v352 = vpop.permute.xlu0 %351
        %355 = vset.pattern.permute.xlu0 0
        %356 = vperm.xlu0 %355, %v298
        %v357 = vpop.permute.xlu0 %356
        %360 = vset.pattern.permute.xlu0 0
        %361 = vperm.xlu0 %360, %v299
        %v362 = vpop.permute.xlu0 %361
        %365 = vset.pattern.permute.xlu0 0
        %366 = vperm.xlu0 %365, %v300
        %v367 = vpop.permute.xlu0 %366
        %370 = vset.pattern.permute.xlu0 0
        %371 = vperm.xlu0 %370, %v301
        %v372 = vpop.permute.xlu0 %371
        %375 = vset.pattern.permute.xlu0 0
        %376 = vperm.xlu0 %375, %v302
        %v377 = vpop.permute.xlu0 %376
        %380 = vset.pattern.permute.xlu0 0
        %381 = vperm.xlu0 %380, %v303
        %v382 = vpop.permute.xlu0 %381
        %v400 = vunpack.c.l.b16 %v271
        %v401 = vunpack.c.l.b16 %v272
        %v402 = vunpack.c.l.b16 %v273
        %v403 = vunpack.c.l.b16 %v274
        %v404 = vunpack.c.l.b16 %v275
        %v405 = vunpack.c.l.b16 %v276
        %v406 = vunpack.c.l.b16 %v277
        %v407 = vunpack.c.l.b16 %v278
        %v408 = vunpack.c.l.b16 %v279
        %v409 = vunpack.c.l.b16 %v280
        %v410 = vunpack.c.l.b16 %v281
        %v411 = vunpack.c.l.b16 %v282
        %v412 = vunpack.c.l.b16 %v283
        %v413 = vunpack.c.l.b16 %v284
        %v414 = vunpack.c.l.b16 %v285
        %v415 = vunpack.c.l.b16 %v286
        %v416 = vpack.c.b16 %v401, %v400
        %v417 = vpack.c.b16 %v403, %v402
        %v418 = vpack.c.b16 %v405, %v404
        %v419 = vpack.c.b16 %v407, %v406
        %v420 = vpack.c.b16 %v409, %v408
        %v421 = vpack.c.b16 %v411, %v410
        %v422 = vpack.c.b16 %v413, %v412
        %v423 = vpack.c.b16 %v415, %v414
        %425 = vst [vmem:[#allocation1] ss:$4 sm:$0xff] %v287
        %v426 = vld.sshfl [vmem:[#allocation1] sm:$0xff pattern:$0x73625140]
        %v427 = vld.sshfl [vmem:[#allocation1 + $0x8] sm:$0xff pattern:$0x73625140]
        %vm428 = vcmask 31744
        %v430 = vsel %vm428, %v416, 0
        %v433 = vsel %vm428, %v417, 0
        %v436 = vsel %vm428, %v418, 0
        %v439 = vsel %vm428, %v419, 0
        %v442 = vsel %vm428, %v420, 0
        %v445 = vsel %vm428, %v421, 0
        %v448 = vsel %vm428, %v422, 0
        %v451 = vsel %vm428, %v423, 0
        %vm453 = vcmask 1041408
        %v454 = vsel %vm453, %v426, 0
        %v456 = vsel %vm453, %v427, 0
        %458 = vmatpush.bf16.msra.mxu0 0
        %459 = vmatpush.bf16.msra.mxu0 0
        %460 = vmatpush.bf16.msra.mxu0 0
        %461 = vmatpush.bf16.msra.mxu0 0
        %462 = vmatpush.bf16.msra.mxu0 0
        %463 = vmatpush.bf16.msra.mxu0 0
        %464 = vmatpush.bf16.msra.mxu0 0
        %465 = vmatpush.bf16.msra.mxu0 %v454
        %466 = vmatmul.bf16.gmra.mxu0 %v430
        %v467 = vpop.f32.mrf.mxu0
        %v468 = vadd.f32 %v307, %v467
        %v469 = vpop.f32.mrf.mxu0
        %v470 = vadd.f32 %v312, %v469
        %471 = vmatmul.bf16.gmra.mxu0 %v433
        %v472 = vpop.f32.mrf.mxu0
        %v473 = vadd.f32 %v317, %v472
        %v474 = vpop.f32.mrf.mxu0
        %v475 = vadd.f32 %v322, %v474
        %476 = vmatmul.bf16.gmra.mxu0 %v436
        %v477 = vpop.f32.mrf.mxu0
        %v478 = vadd.f32 %v327, %v477
        %v479 = vpop.f32.mrf.mxu0
        %v480 = vadd.f32 %v332, %v479
        %481 = vmatmul.bf16.gmra.mxu0 %v439
        %v482 = vpop.f32.mrf.mxu0
        %v483 = vadd.f32 %v337, %v482
        %v484 = vpop.f32.mrf.mxu0
        %v485 = vadd.f32 %v342, %v484
        %486 = vmatmul.bf16.gmra.mxu0 %v442
        %v487 = vpop.f32.mrf.mxu0
        %v488 = vadd.f32 %v347, %v487
        %v489 = vpop.f32.mrf.mxu0
        %v490 = vadd.f32 %v352, %v489
        %491 = vmatmul.bf16.gmra.mxu0 %v445
        %v492 = vpop.f32.mrf.mxu0
        %v493 = vadd.f32 %v357, %v492
        %v494 = vpop.f32.mrf.mxu0
        %v495 = vadd.f32 %v362, %v494
        %496 = vmatmul.bf16.gmra.mxu0 %v448
        %v497 = vpop.f32.mrf.mxu0
        %v498 = vadd.f32 %v367, %v497
        %v499 = vpop.f32.mrf.mxu0
        %v500 = vadd.f32 %v372, %v499
        %501 = vmatmul.bf16.gmra.mxu0 %v451
        %v502 = vpop.f32.mrf.mxu0
        %v503 = vadd.f32 %v377, %v502
        %v504 = vpop.f32.mrf.mxu0
        %v505 = vadd.f32 %v382, %v504
        %506 = vdwg.mxu0
        %507 = vmatpush.bf16.msra.mxu0 0
        %508 = vmatpush.bf16.msra.mxu0 0
        %509 = vmatpush.bf16.msra.mxu0 0
        %510 = vmatpush.bf16.msra.mxu0 0
        %511 = vmatpush.bf16.msra.mxu0 0
        %512 = vmatpush.bf16.msra.mxu0 0
        %513 = vmatpush.bf16.msra.mxu0 0
        %514 = vmatpush.bf16.msra.mxu0 %v456
        %515 = vmatmul.bf16.gmra.mxu0 %v430
        %v516 = vpop.f32.mrf.mxu0
        %v517 = vadd.f32 %v307, %v516
        %v518 = vpop.f32.mrf.mxu0
        %v519 = vadd.f32 %v312, %v518
        %520 = vmatmul.bf16.gmra.mxu0 %v433
        %v521 = vpop.f32.mrf.mxu0
        %v522 = vadd.f32 %v317, %v521
        %v523 = vpop.f32.mrf.mxu0
        %v524 = vadd.f32 %v322, %v523
        %525 = vmatmul.bf16.gmra.mxu0 %v436
        %v526 = vpop.f32.mrf.mxu0
        %v527 = vadd.f32 %v327, %v526
        %v528 = vpop.f32.mrf.mxu0
        %v529 = vadd.f32 %v332, %v528
        %530 = vmatmul.bf16.gmra.mxu0 %v439
        %v531 = vpop.f32.mrf.mxu0
        %v532 = vadd.f32 %v337, %v531
        %v533 = vpop.f32.mrf.mxu0
        %v534 = vadd.f32 %v342, %v533
        %535 = vmatmul.bf16.gmra.mxu0 %v442
        %v536 = vpop.f32.mrf.mxu0
        %v537 = vadd.f32 %v347, %v536
        %v538 = vpop.f32.mrf.mxu0
        %v539 = vadd.f32 %v352, %v538
        %540 = vmatmul.bf16.gmra.mxu0 %v445
        %v541 = vpop.f32.mrf.mxu0
        %v542 = vadd.f32 %v357, %v541
        %v543 = vpop.f32.mrf.mxu0
        %v544 = vadd.f32 %v362, %v543
        %545 = vmatmul.bf16.gmra.mxu0 %v448
        %v546 = vpop.f32.mrf.mxu0
        %v547 = vadd.f32 %v367, %v546
        %v548 = vpop.f32.mrf.mxu0
        %v549 = vadd.f32 %v372, %v548
        %550 = vmatmul.bf16.gmra.mxu0 %v451
        %v551 = vpop.f32.mrf.mxu0
        %v552 = vadd.f32 %v377, %v551
        %v553 = vpop.f32.mrf.mxu0
        %v554 = vadd.f32 %v382, %v553
        %555 = vdwg.mxu0
        %v556 = vmax.f32 %v468, 0.0
        %v557 = vmax.f32 %v517, 0.0
        %v558 = vmax.f32 %v470, 0.0
        %v559 = vmax.f32 %v519, 0.0
        %v560 = vmax.f32 %v473, 0.0
        %v561 = vmax.f32 %v522, 0.0
        %v562 = vmax.f32 %v475, 0.0
        %v563 = vmax.f32 %v524, 0.0
        %v564 = vmax.f32 %v478, 0.0
        %v565 = vmax.f32 %v527, 0.0
        %v566 = vmax.f32 %v480, 0.0
        %v567 = vmax.f32 %v529, 0.0
        %v568 = vmax.f32 %v483, 0.0
        %v569 = vmax.f32 %v532, 0.0
        %v570 = vmax.f32 %v485, 0.0
        %v571 = vmax.f32 %v534, 0.0
        %v572 = vmax.f32 %v488, 0.0
        %v573 = vmax.f32 %v537, 0.0
        %v574 = vmax.f32 %v490, 0.0
        %v575 = vmax.f32 %v539, 0.0
        %v576 = vmax.f32 %v493, 0.0
        %v577 = vmax.f32 %v542, 0.0
        %v578 = vmax.f32 %v495, 0.0
        %v579 = vmax.f32 %v544, 0.0
        %v580 = vmax.f32 %v498, 0.0
        %v581 = vmax.f32 %v547, 0.0
        %v582 = vmax.f32 %v500, 0.0
        %v583 = vmax.f32 %v549, 0.0
        %v584 = vmax.f32 %v503, 0.0
        %v585 = vmax.f32 %v552, 0.0
        %v586 = vmax.f32 %v505, 0.0
        %v587 = vmax.f32 %v554, 0.0
        %v588 = vadd.f32 %v556, %v557
        %v589 = vadd.f32 %v558, %v559
        %v590 = vadd.f32 %v560, %v561
        %v591 = vadd.f32 %v562, %v563
        %v592 = vadd.f32 %v564, %v565
        %v593 = vadd.f32 %v566, %v567
        %v594 = vadd.f32 %v568, %v569
        %v595 = vadd.f32 %v570, %v571
        %v596 = vadd.f32 %v572, %v573
        %v597 = vadd.f32 %v574, %v575
        %v598 = vadd.f32 %v576, %v577
        %v599 = vadd.f32 %v578, %v579
        %v600 = vadd.f32 %v580, %v581
        %v601 = vadd.f32 %v582, %v583
        %v602 = vadd.f32 %v584, %v585
        %v603 = vadd.f32 %v586, %v587
        %v604 = vld [vmem:[#allocation2] sm:$0xff]
        %v605 = vld [vmem:[#allocation2 + $0x8] sm:$0xff]
        %v606 = vld [vmem:[#allocation2 + $0x10] sm:$0xff]
        %v607 = vld [vmem:[#allocation2 + $0x18] sm:$0xff]
        %v608 = vld [vmem:[#allocation2 + $0x20] sm:$0xff]
        %v609 = vld [vmem:[#allocation2 + $0x28] sm:$0xff]
        %v610 = vld [vmem:[#allocation2 + $0x30] sm:$0xff]
        %v611 = vld [vmem:[#allocation2 + $0x38] sm:$0xff]
        %v612 = vld [vmem:[#allocation2 + $0x40] sm:$0xff]
        %v613 = vld [vmem:[#allocation2 + $0x48] sm:$0xff]
        %v614 = vld [vmem:[#allocation2 + $0x50] sm:$0xff]
        %v615 = vld [vmem:[#allocation2 + $0x58] sm:$0xff]
        %v616 = vld [vmem:[#allocation2 + $0x60] sm:$0xff]
        %v617 = vld [vmem:[#allocation2 + $0x68] sm:$0xff]
        %v618 = vld [vmem:[#allocation2 + $0x70] sm:$0xff]
        %v619 = vld [vmem:[#allocation2 + $0x78] sm:$0xff]
        %v620 = vadd.f32 %v604, %v588
        %v621 = vadd.f32 %v605, %v589
        %v622 = vadd.f32 %v606, %v590
        %v623 = vadd.f32 %v607, %v591
        %v624 = vadd.f32 %v608, %v592
        %v625 = vadd.f32 %v609, %v593
        %v626 = vadd.f32 %v610, %v594
        %v627 = vadd.f32 %v611, %v595
        %v628 = vadd.f32 %v612, %v596
        %v629 = vadd.f32 %v613, %v597
        %v630 = vadd.f32 %v614, %v598
        %v631 = vadd.f32 %v615, %v599
        %v632 = vadd.f32 %v616, %v600
        %v633 = vadd.f32 %v617, %v601
        %v634 = vadd.f32 %v618, %v602
        %v635 = vadd.f32 %v619, %v603
        %636 = vst [vmem:[#allocation2] sm:$0xff] %v620
        %637 = vst [vmem:[#allocation2 + $0x8] sm:$0xff] %v621
        %638 = vst [vmem:[#allocation2 + $0x10] sm:$0xff] %v622
        %639 = vst [vmem:[#allocation2 + $0x18] sm:$0xff] %v623
        %640 = vst [vmem:[#allocation2 + $0x20] sm:$0xff] %v624
        %641 = vst [vmem:[#allocation2 + $0x28] sm:$0xff] %v625
        %642 = vst [vmem:[#allocation2 + $0x30] sm:$0xff] %v626
        %643 = vst [vmem:[#allocation2 + $0x38] sm:$0xff] %v627
        %644 = vst [vmem:[#allocation2 + $0x40] sm:$0xff] %v628
        %645 = vst [vmem:[#allocation2 + $0x48] sm:$0xff] %v629
        %646 = vst [vmem:[#allocation2 + $0x50] sm:$0xff] %v630
        %647 = vst [vmem:[#allocation2 + $0x58] sm:$0xff] %v631
        %648 = vst [vmem:[#allocation2 + $0x60] sm:$0xff] %v632
        %649 = vst [vmem:[#allocation2 + $0x68] sm:$0xff] %v633
        %650 = vst [vmem:[#allocation2 + $0x70] sm:$0xff] %v634
        %651 = vst [vmem:[#allocation2 + $0x78] sm:$0xff] %v635
        // Predicated region
        $region45: #{tpu_custom_call.1} parent=39 // pred_check
          %p652 = pneg %p251
        $region46: #{tpu_custom_call.1} parent=39 // pred_check_branch
          %654 = sbr.rel (%p652) target = $region48
        $region47: #{tpu_custom_call.1} parent=39 // pred_region
          %v655 = vld [vmem:[#allocation2] sm:$0xff]
          %v656 = vld [vmem:[#allocation2 + $0x8] sm:$0xff]
          %v657 = vld [vmem:[#allocation2 + $0x10] sm:$0xff]
          %v658 = vld [vmem:[#allocation2 + $0x18] sm:$0xff]
          %v659 = vld [vmem:[#allocation2 + $0x20] sm:$0xff]
          %v660 = vld [vmem:[#allocation2 + $0x28] sm:$0xff]
          %v661 = vld [vmem:[#allocation2 + $0x30] sm:$0xff]
          %v662 = vld [vmem:[#allocation2 + $0x38] sm:$0xff]
          %v663 = vld [vmem:[#allocation2 + $0x40] sm:$0xff]
          %v664 = vld [vmem:[#allocation2 + $0x48] sm:$0xff]
          %v665 = vld [vmem:[#allocation2 + $0x50] sm:$0xff]
          %v666 = vld [vmem:[#allocation2 + $0x58] sm:$0xff]
          %v667 = vld [vmem:[#allocation2 + $0x60] sm:$0xff]
          %v668 = vld [vmem:[#allocation2 + $0x68] sm:$0xff]
          %v669 = vld [vmem:[#allocation2 + $0x70] sm:$0xff]
          %v670 = vld [vmem:[#allocation2 + $0x78] sm:$0xff]
          %671 = vadd.xlane.f32.xlu0 %v655
          %v672 = vpop.xlane.xlu0 %671
          %673 = vadd.xlane.f32.xlu0 %v656
          %v674 = vpop.xlane.xlu0 %673
          %675 = vadd.xlane.f32.xlu0 %v657
          %v676 = vpop.xlane.xlu0 %675
          %677 = vadd.xlane.f32.xlu0 %v658
          %v678 = vpop.xlane.xlu0 %677
          %679 = vadd.xlane.f32.xlu0 %v659
          %v680 = vpop.xlane.xlu0 %679
          %681 = vadd.xlane.f32.xlu0 %v660
          %v682 = vpop.xlane.xlu0 %681
          %683 = vadd.xlane.f32.xlu0 %v661
          %v684 = vpop.xlane.xlu0 %683
          %685 = vadd.xlane.f32.xlu0 %v662
          %v686 = vpop.xlane.xlu0 %685
          %687 = vadd.xlane.f32.xlu0 %v663
          %v688 = vpop.xlane.xlu0 %687
          %689 = vadd.xlane.f32.xlu0 %v664
          %v690 = vpop.xlane.xlu0 %689
          %691 = vadd.xlane.f32.xlu0 %v665
          %v692 = vpop.xlane.xlu0 %691
          %693 = vadd.xlane.f32.xlu0 %v666
          %v694 = vpop.xlane.xlu0 %693
          %695 = vadd.xlane.f32.xlu0 %v667
          %v696 = vpop.xlane.xlu0 %695
          %697 = vadd.xlane.f32.xlu0 %v668
          %v698 = vpop.xlane.xlu0 %697
          %699 = vadd.xlane.f32.xlu0 %v669
          %v700 = vpop.xlane.xlu0 %699
          %701 = vadd.xlane.f32.xlu0 %v670
          %v702 = vpop.xlane.xlu0 %701
          %v703 = vmul.f32 %v672, 0.00390625
          %v704 = vmul.f32 %v674, 0.00390625
          %v705 = vmul.f32 %v676, 0.00390625
          %v706 = vmul.f32 %v678, 0.00390625
          %v707 = vmul.f32 %v680, 0.00390625
          %v708 = vmul.f32 %v682, 0.00390625
          %v709 = vmul.f32 %v684, 0.00390625
          %v710 = vmul.f32 %v686, 0.00390625
          %v711 = vmul.f32 %v688, 0.00390625
          %v712 = vmul.f32 %v690, 0.00390625
          %v713 = vmul.f32 %v692, 0.00390625
          %v714 = vmul.f32 %v694, 0.00390625
          %v715 = vmul.f32 %v696, 0.00390625
          %v716 = vmul.f32 %v698, 0.00390625
          %v717 = vmul.f32 %v700, 0.00390625
          %v718 = vmul.f32 %v702, 0.00390625
          %v719 = vld [vmem:[%s3] sm:$0xff]
          %v720 = vld [vmem:[%s3 + $0x8] sm:$0xff]
          %v721 = vld [vmem:[%s3 + $0x10] sm:$0xff]
          %v722 = vld [vmem:[%s3 + $0x18] sm:$0xff]
          %v723 = vld [vmem:[%s3 + $0x20] sm:$0xff]
          %v724 = vld [vmem:[%s3 + $0x28] sm:$0xff]
          %v725 = vld [vmem:[%s3 + $0x30] sm:$0xff]
          %v726 = vld [vmem:[%s3 + $0x38] sm:$0xff]
          %v727 = vld [vmem:[%s3 + $0x40] sm:$0xff]
          %v728 = vld [vmem:[%s3 + $0x48] sm:$0xff]
          %v729 = vld [vmem:[%s3 + $0x50] sm:$0xff]
          %v730 = vld [vmem:[%s3 + $0x58] sm:$0xff]
          %v731 = vld [vmem:[%s3 + $0x60] sm:$0xff]
          %v732 = vld [vmem:[%s3 + $0x68] sm:$0xff]
          %v733 = vld [vmem:[%s3 + $0x70] sm:$0xff]
          %v734 = vld [vmem:[%s3 + $0x78] sm:$0xff]
          %v735 = vld [vmem:[%s4] sm:$0x1]
          %736 = vxpose.xlu0.b32.start [1/16] %v703, 128
          %737 = vxpose.xlu0.b32.cont [2/16] %v704, 128
          %738 = vxpose.xlu0.b32.cont [3/16] %v705, 128
          %739 = vxpose.xlu0.b32.cont [4/16] %v706, 128
          %740 = vxpose.xlu0.b32.cont [5/16] %v707, 128
          %741 = vxpose.xlu0.b32.cont [6/16] %v708, 128
          %742 = vxpose.xlu0.b32.cont [7/16] %v709, 128
          %743 = vxpose.xlu0.b32.cont [8/16] %v710, 128
          %744 = vxpose.xlu0.b32.cont [9/16] %v711, 128
          %745 = vxpose.xlu0.b32.cont [10/16] %v712, 128
          %746 = vxpose.xlu0.b32.cont [11/16] %v713, 128
          %747 = vxpose.xlu0.b32.cont [12/16] %v714, 128
          %748 = vxpose.xlu0.b32.cont [13/16] %v715, 128
          %749 = vxpose.xlu0.b32.cont [14/16] %v716, 128
          %750 = vxpose.xlu0.b32.cont [15/16] %v717, 128
          %751 = vxpose.xlu0.b32.end [16/16] %v718, 128
          %v752 = vpop.trf.xlu0
          %v753 = vpop.trf.xlu0
          %v754 = vpop.trf.xlu0
          %v755 = vpop.trf.xlu0
          %v756 = vpop.trf.xlu0
          %v757 = vpop.trf.xlu0
          %v758 = vpop.trf.xlu0
          %v759 = vpop.trf.xlu0
          %v760 = vpop.trf.xlu0
          %v761 = vpop.trf.xlu0
          %v762 = vpop.trf.xlu0
          %v763 = vpop.trf.xlu0
          %v764 = vpop.trf.xlu0
          %v765 = vpop.trf.xlu0
          %v766 = vpop.trf.xlu0
          %v767 = vpop.trf.xlu0
          %768 = vmatpush.msra.mxu0 %v734
          %769 = vmatpush.msra.mxu0 %v733
          %770 = vmatpush.msra.mxu0 %v732
          %771 = vmatpush.msra.mxu0 %v731
          %772 = vmatpush.msra.mxu0 %v730
          %773 = vmatpush.msra.mxu0 %v729
          %774 = vmatpush.msra.mxu0 %v728
          %775 = vmatpush.msra.mxu0 %v727
          %776 = vmatpush.msra.mxu0 %v726
          %777 = vmatpush.msra.mxu0 %v725
          %778 = vmatpush.msra.mxu0 %v724
          %779 = vmatpush.msra.mxu0 %v723
          %780 = vmatpush.msra.mxu0 %v722
          %781 = vmatpush.msra.mxu0 %v721
          %782 = vmatpush.msra.mxu0 %v720
          %783 = vmatpush.msra.mxu0 %v719
          %784 = vmatmul.f32.gmra.mxu0 %v752
          %v785 = vpop.f32.mrf.mxu0
          %v786 = vadd.f32 %v735, %v785
          %787 = vdwg.mxu0
          %788 = vst [vmem:[%s239] sm:$0x1] %v786
        $region48: #{tpu_custom_call.1} parent=39 // pred_fallthru
          _
        %s789 = sand.u32 %s151, 1
        %s790 = scalar_lea.sflag [#allocation4], %s789
        %s791 = sand.u32 %s151, 1
        %s792 = scalar_lea.vmem [#allocation3], %s791
        // Predicated region
        $region49: #{tpu_custom_call.1} parent=39 // pred_check
          %p793 = pneg %p161
        $region50: #{tpu_custom_call.1} parent=39 // pred_check_branch
          %795 = sbr.rel (%p793) target = $region52
        $region51: #{tpu_custom_call.1} parent=39 // pred_region
          %797 = vsyncadd %s790, 0
          %s798 = scalar_lea.hbm %s5, %s23
          %s800 = sshll.u32 %s792, 4
          %s801 = int_to_ptr.vmem [resolvable:$true] %s800
          %s802 = sshll.u32 %s798, 4
          %s803 = int_to_ptr.hbm [resolvable:$true] %s802
          %805 = dma.vmem_to_hbm [thread:$0]  %s801, 16, %s803, %s790
        $region52: #{tpu_custom_call.1} parent=39 // pred_fallthru
          _
      $region40: #{tpu_custom_call.1} parent=5 // pred_fallthru
        _
      %p806 = scmp.le.s32.totalorder 2, %s14
      // Predicated region
      $region53: #{tpu_custom_call.1} parent=5 // pred_check
        %p807 = pneg %p806
      $region54: #{tpu_custom_call.1} parent=5 // pred_check_branch
        %809 = sbr.rel (%p807) target = $region56
      $region55: #{tpu_custom_call.1} parent=5 // pred_region
        %s810 = ssub.s32 %s14, 2
        // Predicated region
        $region57: #{tpu_custom_call.1} parent=55 // pred_check
          %p811 = pneg %p167
        $region58: #{tpu_custom_call.1} parent=55 // pred_check_branch
          %813 = sbr.rel (%p811) target = $region60
        $region59: #{tpu_custom_call.1} parent=55 // pred_region
          %s814 = sand.u32 %s152, 1
          %s815 = scalar_lea.sflag [#allocation4], %s814
          %s816 = sand.u32 %s152, 1
          %s817 = scalar_lea.vmem [#allocation3], %s816
          %819 = dma.done %s815, 16
        $region60: #{tpu_custom_call.1} parent=55 // pred_fallthru
          _
      $region56: #{tpu_custom_call.1} parent=5 // pred_fallthru
        _
    $region6: #{tpu_custom_call.1} parent=1 // loop_footer
      %s18 = sadd.s32 1, %s14
    $region7: #{tpu_custom_call.1} parent=1 // loop_footer_branch
      %13 = sbr.rel target = $region3
    $region8: #{tpu_custom_call.1} parent=1 // loop_exit
      _
    %820 = vsyncpa [#allocation4], 1
    %s821 = scalar_lea.sflag [#allocation4], 1
    %822 = vsyncpa %s821, 1

</llo_original>
